<compile_context>
chip_gen: v7x
topology: tpu7x:2x2x1
jax: 0.10.0
libtpu: 0.0.40
codegen_flags: <defaults>
</compile_context>

<pallas_src>
import jax
import jax.numpy as jnp
from jax.experimental import pallas as pl
from jax.experimental.pallas import tpu as pltpu


def _round_up(n, m):
    return ((n + m - 1) // m) * m


# ----------------------------------------------------------------------------
# Kernel
# ----------------------------------------------------------------------------
def dueling_kernel(x_ref,
                   w1_ref, b1_ref,
                   w2_ref, b2_ref,
                   w3_ref, b3_ref,
                   w4_ref, b4_ref,
                   out_ref):
    """Fused dueling head: 4 lane-dense matmuls, dueling merge folded into W4/b4."""
    cdt = w1_ref.dtype  # MXU compute dtype (f32 or bf16); accumulate/bias in f32

    def layer(h, w_ref, b_ref, relu=True):
        y = jnp.dot(h.astype(cdt), w_ref[...],
                    preferred_element_type=jnp.float32) + b_ref[...]
        return jnp.maximum(y, 0.0) if relu else y

    h = layer(x_ref[...], w1_ref, b1_ref)        # (TB, 128)   shared trunk (padded)
    h = layer(h, w2_ref, b2_ref)                 # (TB, 128)   [v2 | a2]
    h = layer(h, w3_ref, b3_ref)                 # (TB, 128)   [v3 | a3 | 0]
    q = layer(h, w4_ref, b4_ref, relu=False)     # (TB, A_pad) dueling-merged Q
    out_ref[...] = q.astype(out_ref.dtype)


# ----------------------------------------------------------------------------
# Wrapper
# ----------------------------------------------------------------------------
def dueling_forward(x, packed, *, tb=4096):
    """x: (B, state_size) -> Q: (B, action_size)."""
    B, S = x.shape
    A = packed["action_size"]
    A_pad = packed["w4"].shape[1]            # round_up(A, 8): small writeback slab

    # Batch tile: multiple of 16 (safe for bf16 sublane packing), capped at tb.
    # For batches worth splitting, force >=2 grid steps so the "parallel" axis
    # can shard across v7x's two TensorCores (grid=(1,) makes it a no-op).
    if B > 256:
        tb = min(tb, _round_up((B + 1) // 2, 16))
    else:
        tb = min(tb, _round_up(B, 16))
    b_pad = _round_up(B, tb)
    if b_pad != B:
        # Zero-pad the ragged tail once (no-op when B is already tile-aligned).
        x = jnp.pad(x, ((0, b_pad - B), (0, 0)))
    grid = (b_pad // tb,)

    def weight_spec(arr):
        # Full-array block, same block every step -> stays resident in VMEM.
        return pl.BlockSpec(arr.shape, lambda i: (0, 0))

    # Advisory cost so XLA schedules neighboring ops around this small kernel.
    flops = 2 * b_pad * (S * 128 + 128 * 128 + 128 * 128 + 128 * A_pad)
    w_bytes = sum(int(packed[k].size) * packed[k].dtype.itemsize
                  for k in ("w1", "b1", "w2", "b2", "w3", "b3", "w4", "b4"))
    bytes_accessed = int(x.size) * x.dtype.itemsize + w_bytes + b_pad * A_pad * 4
    cost = pl.CostEstimate(flops=flops, transcendentals=0,
                           bytes_accessed=bytes_accessed)

    out = pl.pallas_call(
        dueling_kernel,
        out_shape=jax.ShapeDtypeStruct((b_pad, A_pad), jnp.float32),
        grid=grid,
        in_specs=[
            pl.BlockSpec((tb, S), lambda i: (i, 0)),          # x: batch-tiled
            weight_spec(packed["w1"]), weight_spec(packed["b1"]),
            weight_spec(packed["w2"]), weight_spec(packed["b2"]),
            weight_spec(packed["w3"]), weight_spec(packed["b3"]),
            weight_spec(packed["w4"]), weight_spec(packed["b4"]),
        ],
        out_specs=pl.BlockSpec((tb, A_pad), lambda i: (i, 0)),  # narrow Q slab
        compiler_params=pltpu.CompilerParams(
            dimension_semantics=("parallel",),   # shard batch over TCs (v7x)
            # Weights ~0.5 MiB + double-buffered x/out tiles + matmul temps at
            # tb<=4096 is well under 32 MiB; <= half of v7x's 64 MiB physical
            # VMEM and within v5e/v6e scoped budgets.
            vmem_limit_bytes=32 * 1024 * 1024,
        ),
        cost_estimate=cost,
    )(x,
      packed["w1"], packed["b1"],
      packed["w2"], packed["b2"],
      packed["w3"], packed["b3"],
      packed["w4"], packed["b4"])

    # A_pad = round_up(A, 8) (8 for A=4): this slice touches ~2x the useful
    # bytes, not the 32x a 128-wide padded output would.
    return out[:B, :A]


# ----------------------------------------------------------------------------
# Parameter init (PyTorch Linear convention) and one-time weight packing
# ----------------------------------------------------------------------------
def init_linear(key, in_features, out_features):
    """PyTorch-style init U(-1/sqrt(fan_in), 1/sqrt(fan_in)); W stored (in, out)."""
    kw, kb = jax.random.split(key)
    bound = 1.0 / jnp.sqrt(jnp.float32(in_features))
    w = jax.random.uniform(kw, (in_features, out_features), jnp.float32,
                           minval=-bound, maxval=bound)
    b = jax.random.uniform(kb, (1, out_features), jnp.float32,
                           minval=-bound, maxval=bound)
    return w, b


def init_params(key, state_size, action_size):
    keys = jax.random.split(key, 7)
    p = {}
    p["w1"], p["b1"] = init_linear(keys[0], state_size, 64)
    p["w2v"], p["b2v"] = init_linear(keys[1], 64, 64)
    p["w3v"], p["b3v"] = init_linear(keys[2], 64, 32)
    p["w4v"], p["b4v"] = init_linear(keys[3], 32, 1)
    p["w2a"], p["b2a"] = init_linear(keys[4], 64, 64)
    p["w3a"], p["b3a"] = init_linear(keys[5], 64, 32)
    p["w4a"], p["b4a"] = init_linear(keys[6], 32, action_size)
    return p


def pack_params(p, action_size, dtype=jnp.float32):
    """Fuse value/advantage branches + fold dueling merge; done once, offline.

    All hidden widths are padded to 128 lanes (zero columns/rows) so every
    intermediate activation in the kernel is lane-dense; the output width is
    padded only to a multiple of 8 to keep HBM writeback small.
    """
    A = action_size
    A_pad = _round_up(A, 8)

    # Layer 1: pad out-features 64 -> 128.
    w1 = jnp.pad(p["w1"], ((0, 0), (0, 64)))                       # (S, 128)
    b1 = jnp.pad(p["b1"], ((0, 0), (0, 64)))                       # (1, 128)

    # Layer 2: concat value | advantage; pad in-features 64 -> 128 (zero rows).
    w2 = jnp.concatenate([p["w2v"], p["w2a"]], axis=1)             # (64, 128)
    w2 = jnp.pad(w2, ((0, 64), (0, 0)))                            # (128, 128)
    b2 = jnp.concatenate([p["b2v"], p["b2a"]], axis=1)             # (1, 128)

    # Layer 3: block-diagonal so h3 = [v3 | a3]; pad out-features 64 -> 128.
    w3 = jnp.zeros((128, 128), jnp.float32)
    w3 = w3.at[:64, :32].set(p["w3v"]).at[64:128, 32:64].set(p["w3a"])
    b3 = jnp.pad(jnp.concatenate([p["b3v"], p["b3a"]], axis=1),
                 ((0, 0), (0, 64)))                                # (1, 128)

    # Layer 4: fold q = v + a - mean(a) into one matmul.
    #   centering C = I - ones/A so (a @ w4a) @ C = a @ (w4a @ C)
    centering = jnp.eye(A, dtype=jnp.float32) - jnp.full((A, A), 1.0 / A,
                                                         jnp.float32)
    w4_value = jnp.broadcast_to(p["w4v"], (32, A))                 # v to every col
    w4_advantage = p["w4a"] @ centering                            # mean-subtracted
    w4 = jnp.concatenate([w4_value, w4_advantage], axis=0)         # (64, A)
    w4 = jnp.pad(w4, ((0, 64), (0, A_pad - A)))                    # (128, A_pad)
    b4 = p["b4v"] + (p["b4a"] - jnp.mean(p["b4a"]))                # (1, A)
    b4 = jnp.pad(b4, ((0, 0), (0, A_pad - A)))                     # (1, A_pad)

    return {
        "w1": w1.astype(dtype), "b1": b1.astype(jnp.float32),
        "w2": w2.astype(dtype), "b2": b2.astype(jnp.float32),
        "w3": w3.astype(dtype), "b3": b3.astype(jnp.float32),
        "w4": w4.astype(dtype), "b4": b4.astype(jnp.float32),
        "action_size": A,
    }


# ----------------------------------------------------------------------------
# Pure-JAX reference mirroring the PyTorch forward
# ----------------------------------------------------------------------------
def reference_forward(x, p):
    relu = lambda h: jnp.maximum(h, 0.0)
    common = relu(x @ p["w1"] + p["b1"])
    v = relu(common @ p["w2v"] + p["b2v"])
    v = relu(v @ p["w3v"] + p["b3v"])
    v = v @ p["w4v"] + p["b4v"]
    a = relu(common @ p["w2a"] + p["b2a"])
    a = relu(a @ p["w3a"] + p["b3a"])
    a = a @ p["w4a"] + p["b4a"]
    return v + a - jnp.mean(a, axis=1, keepdims=True)


if __name__ == "__main__":
    state_size = 8
    action_size = 4
    batch = 2

    key = jax.random.PRNGKey(0)
    k_params, k_x = jax.random.split(key)
    params = init_params(k_params, state_size, action_size)
    x = jax.random.normal(k_x, (batch, state_size), jnp.float32)

    q_ref = reference_forward(x, params)

    # f32 compute path: strict check against the PyTorch-style reference.
    packed_f32 = pack_params(params, action_size, dtype=jnp.float32)
    q = jax.block_until_ready(dueling_forward(x, packed_f32))
    assert q.shape == (batch, action_size)
    assert jnp.allclose(q, q_ref, atol=1e-5, rtol=1e-5), "f32 mismatch vs reference"

    # bf16 MXU path (halves weight/x DMA bytes; f32 accumulation), loose tol.
    packed_bf16 = pack_params(params, action_size, dtype=jnp.bfloat16)
    q_bf16 = jax.block_until_ready(dueling_forward(x, packed_bf16))
    assert q_bf16.shape == (batch, action_size)
    assert jnp.allclose(q_bf16, q_ref, atol=0.1, rtol=0.1), "bf16 mismatch vs reference"

    print("KERNEL_OK")
</pallas_src>

<mosaic_0001>
module attributes {stable_mosaic.version = 11 : i64} {
  func.func @dueling_kernel(%arg0: i32, %arg1: memref<16x8xf32, #tpu.memory_space<vmem>>, %arg2: memref<8x128xf32, #tpu.memory_space<vmem>>, %arg3: memref<1x128xf32, #tpu.memory_space<vmem>>, %arg4: memref<128x128xf32, #tpu.memory_space<vmem>>, %arg5: memref<1x128xf32, #tpu.memory_space<vmem>>, %arg6: memref<128x128xf32, #tpu.memory_space<vmem>>, %arg7: memref<1x128xf32, #tpu.memory_space<vmem>>, %arg8: memref<128x8xf32, #tpu.memory_space<vmem>>, %arg9: memref<1x8xf32, #tpu.memory_space<vmem>>, %arg10: memref<16x8xf32, #tpu.memory_space<vmem>>) attributes {dimension_semantics = [#tpu.dimension_semantics<parallel>], iteration_bounds = array<i64: 1>, scalar_prefetch = 0 : i64, scratch_operands = 0 : i64, tpu.core_type = #tpu.core_type<tc>, window_params = [{transform_indices = @transform_0, window_bounds = array<i64: 16, 8>}, {pipeline_mode = #tpu.pipeline_mode<synchronous>, transform_indices = @transform_1, window_bounds = array<i64: 8, 128>}, {pipeline_mode = #tpu.pipeline_mode<synchronous>, transform_indices = @transform_2, window_bounds = array<i64: 1, 128>}, {pipeline_mode = #tpu.pipeline_mode<synchronous>, transform_indices = @transform_3, window_bounds = array<i64: 128, 128>}, {pipeline_mode = #tpu.pipeline_mode<synchronous>, transform_indices = @transform_4, window_bounds = array<i64: 1, 128>}, {pipeline_mode = #tpu.pipeline_mode<synchronous>, transform_indices = @transform_5, window_bounds = array<i64: 128, 128>}, {pipeline_mode = #tpu.pipeline_mode<synchronous>, transform_indices = @transform_6, window_bounds = array<i64: 1, 128>}, {pipeline_mode = #tpu.pipeline_mode<synchronous>, transform_indices = @transform_7, window_bounds = array<i64: 128, 8>}, {pipeline_mode = #tpu.pipeline_mode<synchronous>, transform_indices = @transform_8, window_bounds = array<i64: 1, 8>}, {transform_indices = @transform_9, window_bounds = array<i64: 16, 8>}]} {
    %c0 = arith.constant 0 : index
    %c0_0 = arith.constant 0 : index
    %0 = vector.load %arg1[%c0, %c0_0] : memref<16x8xf32, #tpu.memory_space<vmem>>, vector<16x8xf32>
    %c0_1 = arith.constant 0 : index
    %c0_2 = arith.constant 0 : index
    %1 = vector.load %arg2[%c0_1, %c0_2] : memref<8x128xf32, #tpu.memory_space<vmem>>, vector<8x128xf32>
    %cst = arith.constant dense<0.000000e+00> : vector<16x128xf32>
    %2 = tpu.matmul %0, %1, %cst {dimension_numbers = #tpu.dot_dimension_numbers<[1], [0], [0], [1], [0, 0, 1, 1], [], []>} : vector<16x8xf32>, vector<8x128xf32>, vector<16x128xf32> -> vector<16x128xf32>
    %c0_3 = arith.constant 0 : index
    %c0_4 = arith.constant 0 : index
    %3 = vector.load %arg3[%c0_3, %c0_4] : memref<1x128xf32, #tpu.memory_space<vmem>>, vector<1x128xf32>
    %4 = vector.broadcast %3 : vector<1x128xf32> to vector<16x128xf32>
    %5 = arith.addf %2, %4 : vector<16x128xf32>
    %cst_5 = arith.constant 0.000000e+00 : f32
    %6 = vector.broadcast %cst_5 : f32 to vector<16x128xf32>
    %7 = arith.maximumf %5, %6 : vector<16x128xf32>
    %c0_6 = arith.constant 0 : index
    %c0_7 = arith.constant 0 : index
    %8 = vector.load %arg4[%c0_6, %c0_7] : memref<128x128xf32, #tpu.memory_space<vmem>>, vector<128x128xf32>
    %cst_8 = arith.constant dense<0.000000e+00> : vector<16x128xf32>
    %9 = tpu.matmul %7, %8, %cst_8 {dimension_numbers = #tpu.dot_dimension_numbers<[1], [0], [0], [1], [0, 0, 1, 1], [], []>} : vector<16x128xf32>, vector<128x128xf32>, vector<16x128xf32> -> vector<16x128xf32>
    %c0_9 = arith.constant 0 : index
    %c0_10 = arith.constant 0 : index
    %10 = vector.load %arg5[%c0_9, %c0_10] : memref<1x128xf32, #tpu.memory_space<vmem>>, vector<1x128xf32>
    %11 = vector.broadcast %10 : vector<1x128xf32> to vector<16x128xf32>
    %12 = arith.addf %9, %11 : vector<16x128xf32>
    %cst_11 = arith.constant 0.000000e+00 : f32
    %13 = vector.broadcast %cst_11 : f32 to vector<16x128xf32>
    %14 = arith.maximumf %12, %13 : vector<16x128xf32>
    %c0_12 = arith.constant 0 : index
    %c0_13 = arith.constant 0 : index
    %15 = vector.load %arg6[%c0_12, %c0_13] : memref<128x128xf32, #tpu.memory_space<vmem>>, vector<128x128xf32>
    %cst_14 = arith.constant dense<0.000000e+00> : vector<16x128xf32>
    %16 = tpu.matmul %14, %15, %cst_14 {dimension_numbers = #tpu.dot_dimension_numbers<[1], [0], [0], [1], [0, 0, 1, 1], [], []>} : vector<16x128xf32>, vector<128x128xf32>, vector<16x128xf32> -> vector<16x128xf32>
    %c0_15 = arith.constant 0 : index
    %c0_16 = arith.constant 0 : index
    %17 = vector.load %arg7[%c0_15, %c0_16] : memref<1x128xf32, #tpu.memory_space<vmem>>, vector<1x128xf32>
    %18 = vector.broadcast %17 : vector<1x128xf32> to vector<16x128xf32>
    %19 = arith.addf %16, %18 : vector<16x128xf32>
    %cst_17 = arith.constant 0.000000e+00 : f32
    %20 = vector.broadcast %cst_17 : f32 to vector<16x128xf32>
    %21 = arith.maximumf %19, %20 : vector<16x128xf32>
    %c0_18 = arith.constant 0 : index
    %c0_19 = arith.constant 0 : index
    %22 = vector.load %arg8[%c0_18, %c0_19] : memref<128x8xf32, #tpu.memory_space<vmem>>, vector<128x8xf32>
    %cst_20 = arith.constant dense<0.000000e+00> : vector<16x8xf32>
    %23 = tpu.matmul %21, %22, %cst_20 {dimension_numbers = #tpu.dot_dimension_numbers<[1], [0], [0], [1], [0, 0, 1, 1], [], []>} : vector<16x128xf32>, vector<128x8xf32>, vector<16x8xf32> -> vector<16x8xf32>
    %c0_21 = arith.constant 0 : index
    %c0_22 = arith.constant 0 : index
    %24 = vector.load %arg9[%c0_21, %c0_22] : memref<1x8xf32, #tpu.memory_space<vmem>>, vector<1x8xf32>
    %25 = vector.broadcast %24 : vector<1x8xf32> to vector<16x8xf32>
    %26 = arith.addf %23, %25 : vector<16x8xf32>
    %c0_23 = arith.constant 0 : index
    %c0_24 = arith.constant 0 : index
    %27 = vector.load %arg10[%c0_23, %c0_24] : memref<16x8xf32, #tpu.memory_space<vmem>>, vector<16x8xf32>
    tpu.vector_store %arg10[%c0_23, %c0_24], %26 {strides = array<i32>} : memref<16x8xf32, #tpu.memory_space<vmem>>, vector<16x8xf32>,
    return
  }
  func.func @transform_0(%arg0: i32) -> (i32, i32) {
    %c0_i32 = arith.constant 0 : i32
    %c0_i32_0 = arith.constant 0 : i32
    return %arg0, %c0_i32 : i32, i32
  }
  func.func @transform_1(%arg0: i32) -> (i32, i32) {
    %c0_i32 = arith.constant 0 : i32
    %c0_i32_0 = arith.constant 0 : i32
    %c0_i32_1 = arith.constant 0 : i32
    return %c0_i32, %c0_i32_0 : i32, i32
  }
  func.func @transform_2(%arg0: i32) -> (i32, i32) {
    %c0_i32 = arith.constant 0 : i32
    %c0_i32_0 = arith.constant 0 : i32
    %c0_i32_1 = arith.constant 0 : i32
    return %c0_i32, %c0_i32_0 : i32, i32
  }
  func.func @transform_3(%arg0: i32) -> (i32, i32) {
    %c0_i32 = arith.constant 0 : i32
    %c0_i32_0 = arith.constant 0 : i32
    %c0_i32_1 = arith.constant 0 : i32
    return %c0_i32, %c0_i32_0 : i32, i32
  }
  func.func @transform_4(%arg0: i32) -> (i32, i32) {
    %c0_i32 = arith.constant 0 : i32
    %c0_i32_0 = arith.constant 0 : i32
    %c0_i32_1 = arith.constant 0 : i32
    return %c0_i32, %c0_i32_0 : i32, i32
  }
  func.func @transform_5(%arg0: i32) -> (i32, i32) {
    %c0_i32 = arith.constant 0 : i32
    %c0_i32_0 = arith.constant 0 : i32
    %c0_i32_1 = arith.constant 0 : i32
    return %c0_i32, %c0_i32_0 : i32, i32
  }
  func.func @transform_6(%arg0: i32) -> (i32, i32) {
    %c0_i32 = arith.constant 0 : i32
    %c0_i32_0 = arith.constant 0 : i32
    %c0_i32_1 = arith.constant 0 : i32
    return %c0_i32, %c0_i32_0 : i32, i32
  }
  func.func @transform_7(%arg0: i32) -> (i32, i32) {
    %c0_i32 = arith.constant 0 : i32
    %c0_i32_0 = arith.constant 0 : i32
    %c0_i32_1 = arith.constant 0 : i32
    return %c0_i32, %c0_i32_0 : i32, i32
  }
  func.func @transform_8(%arg0: i32) -> (i32, i32) {
    %c0_i32 = arith.constant 0 : i32
    %c0_i32_0 = arith.constant 0 : i32
    %c0_i32_1 = arith.constant 0 : i32
    return %c0_i32, %c0_i32_0 : i32, i32
  }
  func.func @transform_9(%arg0: i32) -> (i32, i32) {
    %c0_i32 = arith.constant 0 : i32
    %c0_i32_0 = arith.constant 0 : i32
    return %arg0, %c0_i32 : i32, i32
  }
}

</mosaic_0001>

<llo_original>
// kernel: tpu_custom_call.1
$region0: #{tpu_custom_call.1}
  #allocation0 [shape = 'u32[]', space=smem, size = 0x4, offset = 0x4, fixed_abs, tag = 'smem constant byte address 0x4 - core index']
  #allocation1 [shape = 'u32[144,128]{1,0:T(1,128)}', space=vmem, size = 0x12000, scoped, tag = 'internal scratch']
  %s0 = inlined_call_operand.vmem [shape: f32[16,8], index: 0, kind: input, shape index: {}]
  %s1 = inlined_call_operand.vmem [shape: f32[8,128], index: 1, kind: input, shape index: {}]
  %s2 = inlined_call_operand.vmem [shape: f32[1,128], index: 2, kind: input, shape index: {}]
  %s3 = inlined_call_operand.vmem [shape: f32[128,128], index: 3, kind: input, shape index: {}]
  %s4 = inlined_call_operand.vmem [shape: f32[1,128], index: 4, kind: input, shape index: {}]
  %s5 = inlined_call_operand.hbm [shape: f32[128,128], index: 5, kind: input, shape index: {}]
  %s6 = inlined_call_operand.vmem [shape: f32[1,128], index: 6, kind: input, shape index: {}]
  %s7 = inlined_call_operand.vmem [shape: f32[128,8], index: 7, kind: input, shape index: {}]
  %s8 = inlined_call_operand.vmem [shape: f32[1,8], index: 8, kind: input, shape index: {}]
  %s9 = inlined_call_operand.vmem [shape: f32[16,8], index: 9, kind: output, shape index: {}]
  %s10 = sld [smem:[#allocation0]]
  $region50: #{tpu_custom_call.1} parent=0
    _
  %s12 = ssub.s32 1, %s10
  %s13 = scalar_select 0, %s12, %s10
  $region1: #{tpu_custom_call.1} parent=0
    #allocation2 [shape = 'u8[65536]{0}', space=vmem, size = 0x10000, scoped, tag = 'input window, operand 5, single buffered']
    #allocation3 [shape = 's32[1]{0}', space=sflag, size = 0x4, scoped, tag = 'scoped memory for tpu_custom_call.1']
    %14 = vsyncpa [#allocation3], 0
    // Predicated region
    $region2: #{tpu_custom_call.1} parent=1 // pred_check
      _
    $region3: #{tpu_custom_call.1} parent=1 // pred_check_branch
      %16 = sbr.rel (0) target = $region5
    $region4: #{tpu_custom_call.1} parent=1 // pred_region
      _
    $region5: #{tpu_custom_call.1} parent=1 // pred_fallthru
      _
    // Predicated region
    $region6: #{tpu_custom_call.1} parent=1 // pred_check
      _
    $region7: #{tpu_custom_call.1} parent=1 // pred_check_branch
      %18 = sbr.rel (0) target = $region9
    $region8: #{tpu_custom_call.1} parent=1 // pred_region
      _
    $region9: #{tpu_custom_call.1} parent=1 // pred_fallthru
      _
    // Predicated region
    $region10: #{tpu_custom_call.1} parent=1 // pred_check
      _
    $region11: #{tpu_custom_call.1} parent=1 // pred_check_branch
      %20 = sbr.rel (0) target = $region13
    $region12: #{tpu_custom_call.1} parent=1 // pred_region
      _
    $region13: #{tpu_custom_call.1} parent=1 // pred_fallthru
      _
    // Predicated region
    $region14: #{tpu_custom_call.1} parent=1 // pred_check
      _
    $region15: #{tpu_custom_call.1} parent=1 // pred_check_branch
      %22 = sbr.rel (0) target = $region17
    $region16: #{tpu_custom_call.1} parent=1 // pred_region
      _
    $region17: #{tpu_custom_call.1} parent=1 // pred_fallthru
      _
    // Predicated region
    $region18: #{tpu_custom_call.1} parent=1 // pred_check
      _
    $region19: #{tpu_custom_call.1} parent=1 // pred_check_branch
      %24 = sbr.rel (0) target = $region21
    $region20: #{tpu_custom_call.1} parent=1 // pred_region
      _
    $region21: #{tpu_custom_call.1} parent=1 // pred_fallthru
      _
    // Predicated region
    $region22: #{tpu_custom_call.1} parent=1 // pred_check
      _
    $region23: #{tpu_custom_call.1} parent=1 // pred_check_branch
      %26 = sbr.rel (0) target = $region25
    $region24: #{tpu_custom_call.1} parent=1 // pred_region
      %s28 = ssub.s32 2048, 2048
      %29 = vsyncadd [#allocation3], %s28
      %s30 = sshll.u32 [#allocation2], 4
      %s31 = int_to_ptr.vmem [resolvable:$true] %s30
      %36 = dma.hbm_to_vmem [thread:$0]  %s5, 2048, %s31, [#allocation3], 128, 128, 8
    $region25: #{tpu_custom_call.1} parent=1 // pred_fallthru
      _
    // Predicated region
    $region26: #{tpu_custom_call.1} parent=1 // pred_check
      _
    $region27: #{tpu_custom_call.1} parent=1 // pred_check_branch
      %38 = sbr.rel (0) target = $region29
    $region28: #{tpu_custom_call.1} parent=1 // pred_region
      _
    $region29: #{tpu_custom_call.1} parent=1 // pred_fallthru
      _
    // Predicated region
    $region30: #{tpu_custom_call.1} parent=1 // pred_check
      _
    $region31: #{tpu_custom_call.1} parent=1 // pred_check_branch
      %40 = sbr.rel (0) target = $region33
    $region32: #{tpu_custom_call.1} parent=1 // pred_region
      _
    $region33: #{tpu_custom_call.1} parent=1 // pred_fallthru
      _
    // Predicated region
    $region34: #{tpu_custom_call.1} parent=1 // pred_check
      _
    $region35: #{tpu_custom_call.1} parent=1 // pred_check_branch
      %42 = sbr.rel (0) target = $region37
    $region36: #{tpu_custom_call.1} parent=1 // pred_region
      _
    $region37: #{tpu_custom_call.1} parent=1 // pred_fallthru
      _
    // Predicated region
    $region38: #{tpu_custom_call.1} parent=1 // pred_check
      _
    $region39: #{tpu_custom_call.1} parent=1 // pred_check_branch
      %44 = sbr.rel (0) target = $region41
    $region40: #{tpu_custom_call.1} parent=1 // pred_region
      %45 = dma.done [#allocation3], 2048
    $region41: #{tpu_custom_call.1} parent=1 // pred_fallthru
      _
    %v46 = vld [vmem:[%s0] sm:$0xff]
    %v47 = vld [vmem:[%s0 + $0x8] sm:$0xff]
    %v48 = vld [vmem:[%s1] sm:$0xff]
    %v49 = vld [vmem:[%s2] sm:$0x1]
    %v51 = vlaneseq
    %v52 = vshrl.u32 %v51, 7
    %v53 = vsub.s32 0, %v52
    %v54 = vrot.slane %v49, %v53
    %vm56 = vcmask 64512
    %v58 = vsel %vm56, %v46, 0
    %v61 = vsel %vm56, %v47, 0
    %63 = vmatprep.subr.mxu0 0.0
    %64 = vmatpush1.msra.mxu0 %v48
    %65 = vmatprep.subr.mxu0 0.0
    %66 = vmatpush1.msra.mxu0 0.0
    %67 = vmatprep.subr.mxu0 0.0
    %68 = vmatpush1.msra.mxu0 0.0
    %69 = vmatprep.subr.mxu0 0.0
    %70 = vmatpush1.msra.mxu0 0.0
    %71 = vmatprep.subr.mxu0 0.0
    %72 = vmatpush1.msra.mxu0 0.0
    %73 = vmatprep.subr.mxu0 0.0
    %74 = vmatpush1.msra.mxu0 0.0
    %75 = vmatprep.subr.mxu0 0.0
    %76 = vmatpush1.msra.mxu0 0.0
    %77 = vmatprep.subr.mxu0 0.0
    %78 = vmatpush1.msra.mxu0 0.0
    %79 = vmatprep.subr.mxu0 0.0
    %80 = vmatpush1.msra.mxu0 0.0
    %81 = vmatprep.subr.mxu0 0.0
    %82 = vmatpush1.msra.mxu0 0.0
    %83 = vmatprep.subr.mxu0 0.0
    %84 = vmatpush1.msra.mxu0 0.0
    %85 = vmatprep.subr.mxu0 0.0
    %86 = vmatpush1.msra.mxu0 0.0
    %87 = vmatprep.subr.mxu0 0.0
    %88 = vmatpush1.msra.mxu0 0.0
    %89 = vmatprep.subr.mxu0 0.0
    %90 = vmatpush1.msra.mxu0 0.0
    %91 = vmatprep.subr.mxu0 0.0
    %92 = vmatpush1.msra.mxu0 0.0
    %93 = vmatprep.subr.mxu0 0.0
    %94 = vmatpush1.msra.mxu0 0.0
    %95 = vmatprep.subr.mxu0 0.0
    %96 = vmatpush1.msra.mxu0 0.0
    %97 = vmatprep.subr.mxu0 0.0
    %98 = vmatpush1.msra.mxu0 0.0
    %99 = vmatprep.subr.mxu0 0.0
    %100 = vmatpush1.msra.mxu0 0.0
    %101 = vmatprep.subr.mxu0 0.0
    %102 = vmatpush1.msra.mxu0 0.0
    %103 = vmatprep.subr.mxu0 0.0
    %104 = vmatpush1.msra.mxu0 0.0
    %105 = vmatprep.subr.mxu0 0.0
    %106 = vmatpush1.msra.mxu0 0.0
    %107 = vmatprep.subr.mxu0 0.0
    %108 = vmatpush1.msra.mxu0 0.0
    %109 = vmatprep.subr.mxu0 0.0
    %110 = vmatpush1.msra.mxu0 0.0
    %111 = vmatprep.subr.mxu0 0.0
    %112 = vmatpush1.msra.mxu0 0.0
    %113 = vmatprep.subr.mxu0 0.0
    %114 = vmatpush1.msra.mxu0 0.0
    %115 = vmatprep.subr.mxu0 0.0
    %116 = vmatpush1.msra.mxu0 0.0
    %117 = vmatprep.subr.mxu0 0.0
    %118 = vmatpush1.msra.mxu0 0.0
    %119 = vmatprep.subr.mxu0 0.0
    %120 = vmatpush1.msra.mxu0 0.0
    %121 = vmatprep.subr.mxu0 0.0
    %122 = vmatpush1.msra.mxu0 0.0
    %123 = vmatprep.subr.mxu0 0.0
    %124 = vmatpush1.msra.mxu0 0.0
    %125 = vmatprep.subr.mxu0 0.0
    %126 = vmatpush1.msra.mxu0 0.0
    %127 = vmatprep.mubr.f32.mxu0 0.0
    %128 = vmatmul.mubr.f32.gmra.mrb[0].mxu0 %v58
    %v129 = vpop.f32.mrb[0].mxu0
    %v130 = vadd.f32 %v54, %v129
    %v131 = vpop.f32.mrb[0].mxu0
    %132 = vmatprep.mubr.f32.mxu0 0.0
    %133 = vmatmul.mubr.f32.gmra.mrb[0].mxu0 %v61
    %v134 = vpop.f32.mrb[0].mxu0
    %v135 = vadd.f32 %v54, %v134
    %v136 = vpop.f32.mrb[0].mxu0
    %137 = vdwg.mxu0
    %v138 = vmax.f32 %v130, 0.0
    %v139 = vmax.f32 %v135, 0.0
    %v140 = vld [vmem:[%s3] sm:$0xff]
    %v141 = vld [vmem:[%s3 + $0x8] sm:$0xff]
    %v142 = vld [vmem:[%s3 + $0x10] sm:$0xff]
    %v143 = vld [vmem:[%s3 + $0x18] sm:$0xff]
    %v144 = vld [vmem:[%s3 + $0x20] sm:$0xff]
    %v145 = vld [vmem:[%s3 + $0x28] sm:$0xff]
    %v146 = vld [vmem:[%s3 + $0x30] sm:$0xff]
    %v147 = vld [vmem:[%s3 + $0x38] sm:$0xff]
    %v148 = vld [vmem:[%s3 + $0x40] sm:$0xff]
    %v149 = vld [vmem:[%s3 + $0x48] sm:$0xff]
    %v150 = vld [vmem:[%s3 + $0x50] sm:$0xff]
    %v151 = vld [vmem:[%s3 + $0x58] sm:$0xff]
    %v152 = vld [vmem:[%s3 + $0x60] sm:$0xff]
    %v153 = vld [vmem:[%s3 + $0x68] sm:$0xff]
    %v154 = vld [vmem:[%s3 + $0x70] sm:$0xff]
    %v155 = vld [vmem:[%s3 + $0x78] sm:$0xff]
    %v156 = vld [vmem:[%s4] sm:$0x1]
    %v158 = vlaneseq
    %v159 = vshrl.u32 %v158, 7
    %v160 = vsub.s32 0, %v159
    %v161 = vrot.slane %v156, %v160
    %163 = vmatprep.subr.mxu0 0.0
    %164 = vmatpush1.msra.mxu0 %v140
    %165 = vmatprep.subr.mxu0 0.0
    %166 = vmatpush1.msra.mxu0 %v141
    %167 = vmatprep.subr.mxu0 0.0
    %168 = vmatpush1.msra.mxu0 %v142
    %169 = vmatprep.subr.mxu0 0.0
    %170 = vmatpush1.msra.mxu0 %v143
    %171 = vmatprep.subr.mxu0 0.0
    %172 = vmatpush1.msra.mxu0 %v144
    %173 = vmatprep.subr.mxu0 0.0
    %174 = vmatpush1.msra.mxu0 %v145
    %175 = vmatprep.subr.mxu0 0.0
    %176 = vmatpush1.msra.mxu0 %v146
    %177 = vmatprep.subr.mxu0 0.0
    %178 = vmatpush1.msra.mxu0 %v147
    %179 = vmatprep.subr.mxu0 0.0
    %180 = vmatpush1.msra.mxu0 %v148
    %181 = vmatprep.subr.mxu0 0.0
    %182 = vmatpush1.msra.mxu0 %v149
    %183 = vmatprep.subr.mxu0 0.0
    %184 = vmatpush1.msra.mxu0 %v150
    %185 = vmatprep.subr.mxu0 0.0
    %186 = vmatpush1.msra.mxu0 %v151
    %187 = vmatprep.subr.mxu0 0.0
    %188 = vmatpush1.msra.mxu0 %v152
    %189 = vmatprep.subr.mxu0 0.0
    %190 = vmatpush1.msra.mxu0 %v153
    %191 = vmatprep.subr.mxu0 0.0
    %192 = vmatpush1.msra.mxu0 %v154
    %193 = vmatprep.subr.mxu0 0.0
    %194 = vmatpush1.msra.mxu0 %v155
    %195 = vmatprep.subr.mxu0 0.0
    %196 = vmatpush1.msra.mxu0 0.0
    %197 = vmatprep.subr.mxu0 0.0
    %198 = vmatpush1.msra.mxu0 0.0
    %199 = vmatprep.subr.mxu0 0.0
    %200 = vmatpush1.msra.mxu0 0.0
    %201 = vmatprep.subr.mxu0 0.0
    %202 = vmatpush1.msra.mxu0 0.0
    %203 = vmatprep.subr.mxu0 0.0
    %204 = vmatpush1.msra.mxu0 0.0
    %205 = vmatprep.subr.mxu0 0.0
    %206 = vmatpush1.msra.mxu0 0.0
    %207 = vmatprep.subr.mxu0 0.0
    %208 = vmatpush1.msra.mxu0 0.0
    %209 = vmatprep.subr.mxu0 0.0
    %210 = vmatpush1.msra.mxu0 0.0
    %211 = vmatprep.subr.mxu0 0.0
    %212 = vmatpush1.msra.mxu0 0.0
    %213 = vmatprep.subr.mxu0 0.0
    %214 = vmatpush1.msra.mxu0 0.0
    %215 = vmatprep.subr.mxu0 0.0
    %216 = vmatpush1.msra.mxu0 0.0
    %217 = vmatprep.subr.mxu0 0.0
    %218 = vmatpush1.msra.mxu0 0.0
    %219 = vmatprep.subr.mxu0 0.0
    %220 = vmatpush1.msra.mxu0 0.0
    %221 = vmatprep.subr.mxu0 0.0
    %222 = vmatpush1.msra.mxu0 0.0
    %223 = vmatprep.subr.mxu0 0.0
    %224 = vmatpush1.msra.mxu0 0.0
    %225 = vmatprep.subr.mxu0 0.0
    %226 = vmatpush1.msra.mxu0 0.0
    %227 = vmatprep.mubr.f32.mxu0 0.0
    %228 = vmatmul.mubr.f32.gmra.mrb[0].mxu0 %v138
    %v229 = vpop.f32.mrb[0].mxu0
    %v230 = vadd.f32 %v161, %v229
    %v231 = vpop.f32.mrb[0].mxu0
    %232 = vmatprep.mubr.f32.mxu0 0.0
    %233 = vmatmul.mubr.f32.gmra.mrb[0].mxu0 %v139
    %v234 = vpop.f32.mrb[0].mxu0
    %v235 = vadd.f32 %v161, %v234
    %v236 = vpop.f32.mrb[0].mxu0
    %237 = vdwg.mxu0
    %v238 = vmax.f32 %v230, 0.0
    %v239 = vmax.f32 %v235, 0.0
    %v240 = vld [vmem:[#allocation2] sm:$0xff]
    %v241 = vld [vmem:[#allocation2 + $0x8] sm:$0xff]
    %v242 = vld [vmem:[#allocation2 + $0x10] sm:$0xff]
    %v243 = vld [vmem:[#allocation2 + $0x18] sm:$0xff]
    %v244 = vld [vmem:[#allocation2 + $0x20] sm:$0xff]
    %v245 = vld [vmem:[#allocation2 + $0x28] sm:$0xff]
    %v246 = vld [vmem:[#allocation2 + $0x30] sm:$0xff]
    %v247 = vld [vmem:[#allocation2 + $0x38] sm:$0xff]
    %v248 = vld [vmem:[#allocation2 + $0x40] sm:$0xff]
    %v249 = vld [vmem:[#allocation2 + $0x48] sm:$0xff]
    %v250 = vld [vmem:[#allocation2 + $0x50] sm:$0xff]
    %v251 = vld [vmem:[#allocation2 + $0x58] sm:$0xff]
    %v252 = vld [vmem:[#allocation2 + $0x60] sm:$0xff]
    %v253 = vld [vmem:[#allocation2 + $0x68] sm:$0xff]
    %v254 = vld [vmem:[#allocation2 + $0x70] sm:$0xff]
    %v255 = vld [vmem:[#allocation2 + $0x78] sm:$0xff]
    %v256 = vld [vmem:[%s6] sm:$0x1]
    %v258 = vlaneseq
    %v259 = vshrl.u32 %v258, 7
    %v260 = vsub.s32 0, %v259
    %v261 = vrot.slane %v256, %v260
    %263 = vmatprep.subr.mxu0 0.0
    %264 = vmatpush1.msra.mxu0 %v240
    %265 = vmatprep.subr.mxu0 0.0
    %266 = vmatpush1.msra.mxu0 %v241
    %267 = vmatprep.subr.mxu0 0.0
    %268 = vmatpush1.msra.mxu0 %v242
    %269 = vmatprep.subr.mxu0 0.0
    %270 = vmatpush1.msra.mxu0 %v243
    %271 = vmatprep.subr.mxu0 0.0
    %272 = vmatpush1.msra.mxu0 %v244
    %273 = vmatprep.subr.mxu0 0.0
    %274 = vmatpush1.msra.mxu0 %v245
    %275 = vmatprep.subr.mxu0 0.0
    %276 = vmatpush1.msra.mxu0 %v246
    %277 = vmatprep.subr.mxu0 0.0
    %278 = vmatpush1.msra.mxu0 %v247
    %279 = vmatprep.subr.mxu0 0.0
    %280 = vmatpush1.msra.mxu0 %v248
    %281 = vmatprep.subr.mxu0 0.0
    %282 = vmatpush1.msra.mxu0 %v249
    %283 = vmatprep.subr.mxu0 0.0
    %284 = vmatpush1.msra.mxu0 %v250
    %285 = vmatprep.subr.mxu0 0.0
    %286 = vmatpush1.msra.mxu0 %v251
    %287 = vmatprep.subr.mxu0 0.0
    %288 = vmatpush1.msra.mxu0 %v252
    %289 = vmatprep.subr.mxu0 0.0
    %290 = vmatpush1.msra.mxu0 %v253
    %291 = vmatprep.subr.mxu0 0.0
    %292 = vmatpush1.msra.mxu0 %v254
    %293 = vmatprep.subr.mxu0 0.0
    %294 = vmatpush1.msra.mxu0 %v255
    %295 = vmatprep.subr.mxu0 0.0
    %296 = vmatpush1.msra.mxu0 0.0
    %297 = vmatprep.subr.mxu0 0.0
    %298 = vmatpush1.msra.mxu0 0.0
    %299 = vmatprep.subr.mxu0 0.0
    %300 = vmatpush1.msra.mxu0 0.0
    %301 = vmatprep.subr.mxu0 0.0
    %302 = vmatpush1.msra.mxu0 0.0
    %303 = vmatprep.subr.mxu0 0.0
    %304 = vmatpush1.msra.mxu0 0.0
    %305 = vmatprep.subr.mxu0 0.0
    %306 = vmatpush1.msra.mxu0 0.0
    %307 = vmatprep.subr.mxu0 0.0
    %308 = vmatpush1.msra.mxu0 0.0
    %309 = vmatprep.subr.mxu0 0.0
    %310 = vmatpush1.msra.mxu0 0.0
    %311 = vmatprep.subr.mxu0 0.0
    %312 = vmatpush1.msra.mxu0 0.0
    %313 = vmatprep.subr.mxu0 0.0
    %314 = vmatpush1.msra.mxu0 0.0
    %315 = vmatprep.subr.mxu0 0.0
    %316 = vmatpush1.msra.mxu0 0.0
    %317 = vmatprep.subr.mxu0 0.0
    %318 = vmatpush1.msra.mxu0 0.0
    %319 = vmatprep.subr.mxu0 0.0
    %320 = vmatpush1.msra.mxu0 0.0
    %321 = vmatprep.subr.mxu0 0.0
    %322 = vmatpush1.msra.mxu0 0.0
    %323 = vmatprep.subr.mxu0 0.0
    %324 = vmatpush1.msra.mxu0 0.0
    %325 = vmatprep.subr.mxu0 0.0
    %326 = vmatpush1.msra.mxu0 0.0
    %327 = vmatprep.mubr.f32.mxu0 0.0
    %328 = vmatmul.mubr.f32.gmra.mrb[0].mxu0 %v238
    %v329 = vpop.f32.mrb[0].mxu0
    %v330 = vadd.f32 %v261, %v329
    %v331 = vpop.f32.mrb[0].mxu0
    %332 = vmatprep.mubr.f32.mxu0 0.0
    %333 = vmatmul.mubr.f32.gmra.mrb[0].mxu0 %v239
    %v334 = vpop.f32.mrb[0].mxu0
    %v335 = vadd.f32 %v261, %v334
    %v336 = vpop.f32.mrb[0].mxu0
    %337 = vdwg.mxu0
    %v338 = vmax.f32 %v330, 0.0
    %v339 = vmax.f32 %v335, 0.0
    %v340 = vld [vmem:[%s7] sm:$0xff]
    %v341 = vld [vmem:[%s7 + $0x8] sm:$0xff]
    %v342 = vld [vmem:[%s7 + $0x10] sm:$0xff]
    %v343 = vld [vmem:[%s7 + $0x18] sm:$0xff]
    %v344 = vld [vmem:[%s7 + $0x20] sm:$0xff]
    %v345 = vld [vmem:[%s7 + $0x28] sm:$0xff]
    %v346 = vld [vmem:[%s7 + $0x30] sm:$0xff]
    %v347 = vld [vmem:[%s7 + $0x38] sm:$0xff]
    %v348 = vld [vmem:[%s7 + $0x40] sm:$0xff]
    %v349 = vld [vmem:[%s7 + $0x48] sm:$0xff]
    %v350 = vld [vmem:[%s7 + $0x50] sm:$0xff]
    %v351 = vld [vmem:[%s7 + $0x58] sm:$0xff]
    %v352 = vld [vmem:[%s7 + $0x60] sm:$0xff]
    %v353 = vld [vmem:[%s7 + $0x68] sm:$0xff]
    %v354 = vld [vmem:[%s7 + $0x70] sm:$0xff]
    %v355 = vld [vmem:[%s7 + $0x78] sm:$0xff]
    %v356 = vld [vmem:[%s8] sm:$0x1]
    %v358 = vlaneseq
    %v359 = vshrl.u32 %v358, 7
    %v360 = vsub.s32 0, %v359
    %v361 = vrot.slane %v356, %v360
    %363 = vmatprep.subr.mxu0 0.0
    %364 = vmatpush1.msra.mxu0 %v340
    %365 = vmatprep.subr.mxu0 0.0
    %366 = vmatpush1.msra.mxu0 %v341
    %367 = vmatprep.subr.mxu0 0.0
    %368 = vmatpush1.msra.mxu0 %v342
    %369 = vmatprep.subr.mxu0 0.0
    %370 = vmatpush1.msra.mxu0 %v343
    %371 = vmatprep.subr.mxu0 0.0
    %372 = vmatpush1.msra.mxu0 %v344
    %373 = vmatprep.subr.mxu0 0.0
    %374 = vmatpush1.msra.mxu0 %v345
    %375 = vmatprep.subr.mxu0 0.0
    %376 = vmatpush1.msra.mxu0 %v346
    %377 = vmatprep.subr.mxu0 0.0
    %378 = vmatpush1.msra.mxu0 %v347
    %379 = vmatprep.subr.mxu0 0.0
    %380 = vmatpush1.msra.mxu0 %v348
    %381 = vmatprep.subr.mxu0 0.0
    %382 = vmatpush1.msra.mxu0 %v349
    %383 = vmatprep.subr.mxu0 0.0
    %384 = vmatpush1.msra.mxu0 %v350
    %385 = vmatprep.subr.mxu0 0.0
    %386 = vmatpush1.msra.mxu0 %v351
    %387 = vmatprep.subr.mxu0 0.0
    %388 = vmatpush1.msra.mxu0 %v352
    %389 = vmatprep.subr.mxu0 0.0
    %390 = vmatpush1.msra.mxu0 %v353
    %391 = vmatprep.subr.mxu0 0.0
    %392 = vmatpush1.msra.mxu0 %v354
    %393 = vmatprep.subr.mxu0 0.0
    %394 = vmatpush1.msra.mxu0 %v355
    %395 = vmatprep.subr.mxu0 0.0
    %396 = vmatpush1.msra.mxu0 0.0
    %397 = vmatprep.subr.mxu0 0.0
    %398 = vmatpush1.msra.mxu0 0.0
    %399 = vmatprep.subr.mxu0 0.0
    %400 = vmatpush1.msra.mxu0 0.0
    %401 = vmatprep.subr.mxu0 0.0
    %402 = vmatpush1.msra.mxu0 0.0
    %403 = vmatprep.subr.mxu0 0.0
    %404 = vmatpush1.msra.mxu0 0.0
    %405 = vmatprep.subr.mxu0 0.0
    %406 = vmatpush1.msra.mxu0 0.0
    %407 = vmatprep.subr.mxu0 0.0
    %408 = vmatpush1.msra.mxu0 0.0
    %409 = vmatprep.subr.mxu0 0.0
    %410 = vmatpush1.msra.mxu0 0.0
    %411 = vmatprep.subr.mxu0 0.0
    %412 = vmatpush1.msra.mxu0 0.0
    %413 = vmatprep.subr.mxu0 0.0
    %414 = vmatpush1.msra.mxu0 0.0
    %415 = vmatprep.subr.mxu0 0.0
    %416 = vmatpush1.msra.mxu0 0.0
    %417 = vmatprep.subr.mxu0 0.0
    %418 = vmatpush1.msra.mxu0 0.0
    %419 = vmatprep.subr.mxu0 0.0
    %420 = vmatpush1.msra.mxu0 0.0
    %421 = vmatprep.subr.mxu0 0.0
    %422 = vmatpush1.msra.mxu0 0.0
    %423 = vmatprep.subr.mxu0 0.0
    %424 = vmatpush1.msra.mxu0 0.0
    %425 = vmatprep.subr.mxu0 0.0
    %426 = vmatpush1.msra.mxu0 0.0
    %427 = vmatprep.mubr.f32.mxu0 0.0
    %428 = vmatmul.mubr.f32.gmra.mrb[0].mxu0 %v338
    %v429 = vpop.f32.mrb[0].mxu0
    %v430 = vadd.f32 %v361, %v429
    %v431 = vpop.f32.mrb[0].mxu0
    %432 = vmatprep.mubr.f32.mxu0 0.0
    %433 = vmatmul.mubr.f32.gmra.mrb[0].mxu0 %v339
    %v434 = vpop.f32.mrb[0].mxu0
    %v435 = vadd.f32 %v361, %v434
    %v436 = vpop.f32.mrb[0].mxu0
    %437 = vdwg.mxu0
    %438 = vst.msk [vmem:[%s9] sm:$0xff] %vm56, %v430
    %439 = vst.msk [vmem:[%s9 + $0x8] sm:$0xff] %vm56, %v435
    // Predicated region
    $region42: #{tpu_custom_call.1} parent=1 // pred_check
      _
    $region43: #{tpu_custom_call.1} parent=1 // pred_check_branch
      %441 = sbr.rel (0) target = $region45
    $region44: #{tpu_custom_call.1} parent=1 // pred_region
      _
    $region45: #{tpu_custom_call.1} parent=1 // pred_fallthru
      _
    // Predicated region
    $region46: #{tpu_custom_call.1} parent=1 // pred_check
      _
    $region47: #{tpu_custom_call.1} parent=1 // pred_check_branch
      %443 = sbr.rel (0) target = $region49
    $region48: #{tpu_custom_call.1} parent=1 // pred_region
      _
    $region49: #{tpu_custom_call.1} parent=1 // pred_fallthru
      _
    %444 = vsyncpa [#allocation3], 1

</llo_original>
